<compile_context>
chip_gen: v7x
topology: tpu7x:2x2x1
jax: 0.10.0
libtpu: 0.0.40
codegen_flags: <defaults>
</compile_context>

<pallas_src>
import math
import functools

import jax
import jax.numpy as jnp
from jax.experimental import pallas as pl
from jax.experimental.pallas import tpu as pltpu


def encoder_embed_kernel(ids_ref, tok_ref, pos_ref, out_ref, *, scale, B, S):
    """Single grid step handles the whole (B, S, H) output.

    ids_ref : VMEM [B*S, 1] int32   (all token ids, row-major over (B, S))
    tok_ref : VMEM [V, H]           (full token-embedding table)
    pos_ref : VMEM [S, H]           (first S rows of the position table)
    out_ref : VMEM [B, S, H]        (full output)
    """
    ids = ids_ref[...]                       # (B*S, 1) int32
    rows = ids.shape[0]                      # B*S
    V, H = tok_ref.shape

    # One-hot gather on the MXU: one_hot[r, v] = (ids[r] == v).
    vocab_iota = jax.lax.broadcasted_iota(jnp.int32, (rows, V), 1)
    one_hot = (vocab_iota == ids).astype(jnp.float32)            # (B*S, V)

    gathered = jnp.dot(
        one_hot,
        tok_ref[...],
        preferred_element_type=jnp.float32,
        precision=jax.lax.Precision.HIGHEST,                      # exact f32 gather
    )                                                             # (B*S, H) f32

    # Tile-aligned reshape (rows = B*S, S multiple of 8) + broadcast pos add.
    pos = pos_ref[...].astype(jnp.float32)                        # (S, H)
    result = gathered.reshape(B, S, H) * scale + pos[None, :, :]  # (B, S, H)
    out_ref[...] = result.astype(out_ref.dtype)                   # one dense store


def encoder_forward(src, src_mask, tok_emb, pos_emb):
    """Pallas implementation of Encoder.forward (embedding hot path in-kernel)."""
    del src_mask  # mask is only consumed by EncoderLayer, which is identity here
    B, S = src.shape
    V, H = tok_emb.shape
    assert S <= pos_emb.shape[0], "sequence length exceeds max_length"
    scale = float(math.sqrt(H))  # PyTorch intent: sqrt(hid_dim) scaling

    # Layout plumbing only: all token ids as one (B*S, 1) column -> single DMA,
    # no per-batch id fetches, no in-kernel dynamic slicing.
    ids_col = src.astype(jnp.int32).reshape(B * S, 1)
    pos_slice = pos_emb[:S]

    kernel = functools.partial(encoder_embed_kernel, scale=scale, B=B, S=S)

    cost = pl.CostEstimate(
        flops=2 * B * S * V * H * 3,  # ~3 bf16 MXU passes for HIGHEST f32
        transcendentals=0,
        bytes_accessed=V * H * 4 + S * H * 4 + B * S * 4 + B * S * H * 4,
    )

    out = pl.pallas_call(
        kernel,
        out_shape=jax.ShapeDtypeStruct((B, S, H), jnp.float32),
        grid=(1,),  # single step: no per-step pipeline overhead, one src DMA
        in_specs=[
            pl.BlockSpec((B * S, 1), lambda i: (0, 0)),   # all ids, once
            pl.BlockSpec((V, H), lambda i: (0, 0)),        # tok table (VMEM)
            pl.BlockSpec((S, H), lambda i: (0, 0)),        # pos rows
        ],
        out_specs=pl.BlockSpec((B, S, H), lambda i: (0, 0, 0)),
        compiler_params=pltpu.CompilerParams(
            dimension_semantics=("arbitrary",)),
        cost_estimate=cost,
    )(ids_col, tok_emb, pos_slice)

    # nn.Dropout -> identity at inference; EncoderLayer stack -> identity.
    return out


if __name__ == "__main__":
    # Small shapes consistent with the module.
    input_dim = 64      # vocab size
    hid_dim = 128       # hidden size (lane-dense)
    max_length = 16
    batch = 2
    seq = 8

    key = jax.random.PRNGKey(0)
    k_tok, k_pos, k_src = jax.random.split(key, 3)

    # Deterministic parameter init (shapes from nn.Embedding in __init__).
    tok_embedding = jax.random.normal(k_tok, (input_dim, hid_dim), dtype=jnp.float32)
    pos_embedding = jax.random.normal(k_pos, (max_length, hid_dim), dtype=jnp.float32)

    # Example inputs.
    src = jax.random.randint(k_src, (batch, seq), 0, input_dim, dtype=jnp.int32)
    src_mask = jnp.ones((batch, 1, 1, seq), dtype=jnp.float32)  # unused (identity layers)

    out = encoder_forward(src, src_mask, tok_embedding, pos_embedding)
    out = jax.block_until_ready(out)

    # Reference check in plain JAX.
    ref = tok_embedding[src] * math.sqrt(hid_dim) + pos_embedding[jnp.arange(seq)][None]
    assert out.shape == (batch, seq, hid_dim)
    assert jnp.allclose(out, ref, atol=1e-5, rtol=1e-5)

    print("KERNEL_OK")
</pallas_src>

<mosaic_0001>
module attributes {stable_mosaic.version = 11 : i64} {
  func.func @encoder_embed_kernel(%arg0: i32, %arg1: memref<16x1xi32, #tpu.memory_space<vmem>>, %arg2: memref<64x128xf32, #tpu.memory_space<vmem>>, %arg3: memref<8x128xf32, #tpu.memory_space<vmem>>, %arg4: memref<2x8x128xf32, #tpu.memory_space<vmem>>) attributes {dimension_semantics = [#tpu.dimension_semantics<arbitrary>], iteration_bounds = array<i64: 1>, scalar_prefetch = 0 : i64, scratch_operands = 0 : i64, tpu.core_type = #tpu.core_type<tc>, window_params = [{pipeline_mode = #tpu.pipeline_mode<synchronous>, transform_indices = @transform_0, window_bounds = array<i64: 16, 1>}, {pipeline_mode = #tpu.pipeline_mode<synchronous>, transform_indices = @transform_1, window_bounds = array<i64: 64, 128>}, {pipeline_mode = #tpu.pipeline_mode<synchronous>, transform_indices = @transform_2, window_bounds = array<i64: 8, 128>}, {pipeline_mode = #tpu.pipeline_mode<synchronous>, transform_indices = @transform_3, window_bounds = array<i64: 2, 8, 128>}]} {
    %c0 = arith.constant 0 : index
    %c0_0 = arith.constant 0 : index
    %0 = vector.load %arg1[%c0, %c0_0] : memref<16x1xi32, #tpu.memory_space<vmem>>, vector<16x1xi32>
    %1 = tpu.iota {dimensions = array<i32: 1>} : vector<16x64xi32>
    %2 = vector.broadcast %0 : vector<16x1xi32> to vector<16x64xi32>
    %3 = arith.cmpi eq, %1, %2 : vector<16x64xi32>
    %4 = arith.extui %3 : vector<16x64xi1> to vector<16x64xi32>
    %5 = arith.sitofp %4 : vector<16x64xi32> to vector<16x64xf32>
    %c0_1 = arith.constant 0 : index
    %c0_2 = arith.constant 0 : index
    %6 = vector.load %arg2[%c0_1, %c0_2] : memref<64x128xf32, #tpu.memory_space<vmem>>, vector<64x128xf32>
    %cst = arith.constant dense<0.000000e+00> : vector<16x128xf32>
    %7 = tpu.matmul %5, %6, %cst {dimension_numbers = #tpu.dot_dimension_numbers<[1], [0], [0], [1], [0, 0, 1, 1], [], []>, precision = #tpu.contract_precision<fp32>} : vector<16x64xf32>, vector<64x128xf32>, vector<16x128xf32> -> vector<16x128xf32>
    %c0_3 = arith.constant 0 : index
    %c0_4 = arith.constant 0 : index
    %8 = vector.load %arg3[%c0_3, %c0_4] : memref<8x128xf32, #tpu.memory_space<vmem>>, vector<8x128xf32>
    %9 = vector.shape_cast %7 : vector<16x128xf32> to vector<2x8x128xf32>
    %cst_5 = arith.constant 11.3137083 : f32
    %10 = vector.broadcast %cst_5 : f32 to vector<2x8x128xf32>
    %11 = arith.mulf %9, %10 : vector<2x8x128xf32>
    %12 = vector.shape_cast %8 : vector<8x128xf32> to vector<1x8x128xf32>
    %13 = vector.broadcast %12 : vector<1x8x128xf32> to vector<2x8x128xf32>
    %14 = arith.addf %11, %13 : vector<2x8x128xf32>
    %c0_6 = arith.constant 0 : index
    %c0_7 = arith.constant 0 : index
    %c0_8 = arith.constant 0 : index
    %15 = vector.load %arg4[%c0_6, %c0_7, %c0_8] : memref<2x8x128xf32, #tpu.memory_space<vmem>>, vector<2x8x128xf32>
    tpu.vector_store %arg4[%c0_6, %c0_7, %c0_8], %14 {strides = array<i32>} : memref<2x8x128xf32, #tpu.memory_space<vmem>>, vector<2x8x128xf32>,
    return
  }
  func.func @transform_0(%arg0: i32) -> (i32, i32) {
    %c0_i32 = arith.constant 0 : i32
    %c0_i32_0 = arith.constant 0 : i32
    %c0_i32_1 = arith.constant 0 : i32
    return %c0_i32, %c0_i32_0 : i32, i32
  }
  func.func @transform_1(%arg0: i32) -> (i32, i32) {
    %c0_i32 = arith.constant 0 : i32
    %c0_i32_0 = arith.constant 0 : i32
    %c0_i32_1 = arith.constant 0 : i32
    return %c0_i32, %c0_i32_0 : i32, i32
  }
  func.func @transform_2(%arg0: i32) -> (i32, i32) {
    %c0_i32 = arith.constant 0 : i32
    %c0_i32_0 = arith.constant 0 : i32
    %c0_i32_1 = arith.constant 0 : i32
    return %c0_i32, %c0_i32_0 : i32, i32
  }
  func.func @transform_3(%arg0: i32) -> (i32, i32, i32) {
    %c0_i32 = arith.constant 0 : i32
    %c0_i32_0 = arith.constant 0 : i32
    %c0_i32_1 = arith.constant 0 : i32
    %c0_i32_2 = arith.constant 0 : i32
    return %c0_i32, %c0_i32_0, %c0_i32_1 : i32, i32, i32
  }
}

</mosaic_0001>

<llo_original>
// kernel: tpu_custom_call.1
$region0: #{tpu_custom_call.1}
  #allocation0 [shape = 'u32[]', space=smem, size = 0x4, offset = 0x4, fixed_abs, tag = 'smem constant byte address 0x4 - core index']
  #allocation1 [shape = 'u32[144,128]{1,0:T(1,128)}', space=vmem, size = 0x12000, scoped, tag = 'internal scratch']
  %s0 = inlined_call_operand.vmem [shape: s32[16,1], index: 0, kind: input, shape index: {}]
  %s1 = inlined_call_operand.hbm [shape: f32[64,128], index: 1, kind: input, shape index: {}]
  %s2 = inlined_call_operand.vmem [shape: f32[8,128], index: 2, kind: input, shape index: {}]
  %s3 = inlined_call_operand.hbm [shape: f32[2,8,128], index: 3, kind: output, shape index: {}]
  %s4 = sld [smem:[#allocation0]]
  $region26: #{tpu_custom_call.1} parent=0
    _
  %s6 = ssub.s32 1, %s4
  %s7 = scalar_select 0, %s6, %s4
  $region1: #{tpu_custom_call.1} parent=0
    #allocation2 [shape = 'u8[32768]{0}', space=vmem, size = 0x8000, scoped, tag = 'input window, operand 1, single buffered']
    #allocation3 [shape = 's32[1]{0}', space=sflag, size = 0x4, scoped, tag = 'scoped memory for tpu_custom_call.1']
    #allocation4 [shape = 's32[1]{0}', space=sflag, size = 0x4, scoped, tag = 'scoped memory for tpu_custom_call.1']
    #allocation5 [shape = 'u8[8192]{0}', space=vmem, size = 0x2000, scoped, tag = 'output window, operand 0, single buffered']
    %8 = vsyncpa [#allocation3], 0
    %9 = vsyncpa [#allocation4], 0
    // Predicated region
    $region2: #{tpu_custom_call.1} parent=1 // pred_check
      _
    $region3: #{tpu_custom_call.1} parent=1 // pred_check_branch
      %11 = sbr.rel (0) target = $region5
    $region4: #{tpu_custom_call.1} parent=1 // pred_region
      _
    $region5: #{tpu_custom_call.1} parent=1 // pred_fallthru
      _
    // Predicated region
    $region6: #{tpu_custom_call.1} parent=1 // pred_check
      _
    $region7: #{tpu_custom_call.1} parent=1 // pred_check_branch
      %13 = sbr.rel (0) target = $region9
    $region8: #{tpu_custom_call.1} parent=1 // pred_region
      %s15 = ssub.s32 1024, 1024
      %16 = vsyncadd [#allocation3], %s15
      %s17 = sshll.u32 [#allocation2], 4
      %s18 = int_to_ptr.vmem [resolvable:$true] %s17
      %23 = dma.hbm_to_vmem [thread:$0]  %s1, 1024, %s18, [#allocation3], 128, 128, 8
    $region9: #{tpu_custom_call.1} parent=1 // pred_fallthru
      _
    // Predicated region
    $region10: #{tpu_custom_call.1} parent=1 // pred_check
      _
    $region11: #{tpu_custom_call.1} parent=1 // pred_check_branch
      %25 = sbr.rel (0) target = $region13
    $region12: #{tpu_custom_call.1} parent=1 // pred_region
      _
    $region13: #{tpu_custom_call.1} parent=1 // pred_fallthru
      _
    // Predicated region
    $region14: #{tpu_custom_call.1} parent=1 // pred_check
      _
    $region15: #{tpu_custom_call.1} parent=1 // pred_check_branch
      %27 = sbr.rel (0) target = $region17
    $region16: #{tpu_custom_call.1} parent=1 // pred_region
      %28 = dma.done [#allocation3], 1024
    $region17: #{tpu_custom_call.1} parent=1 // pred_fallthru
      _
    %v29 = vld [vmem:[%s0] sm:$0xff]
    %v30 = vld [vmem:[%s0 + $0x8] sm:$0xff]
    %v31 = vlaneseq
    %v32 = vand.u32 %v31, 127
    %33 = vset.pattern.permute.xlu0 0
    %34 = vperm.xlu0 %33, %v29
    %v35 = vpop.permute.xlu0 %34
    %36 = vset.pattern.permute.xlu0 0
    %37 = vperm.xlu0 %36, %v30
    %v38 = vpop.permute.xlu0 %37
    %vm39 = vcmp.eq.s32.totalorder %v32, %v35
    %vm40 = vcmp.eq.s32.totalorder %v32, %v38
    %v41 = vsel %vm39, 1, 0
    %v42 = vsel %vm40, 1, 0
    %v43 = vcvt.s32.f32 %v41
    %v44 = vcvt.s32.f32 %v42
    %v45 = vld [vmem:[#allocation2] sm:$0xff]
    %v46 = vld [vmem:[#allocation2 + $0x8] sm:$0xff]
    %v47 = vld [vmem:[#allocation2 + $0x10] sm:$0xff]
    %v48 = vld [vmem:[#allocation2 + $0x18] sm:$0xff]
    %v49 = vld [vmem:[#allocation2 + $0x20] sm:$0xff]
    %v50 = vld [vmem:[#allocation2 + $0x28] sm:$0xff]
    %v51 = vld [vmem:[#allocation2 + $0x30] sm:$0xff]
    %v52 = vld [vmem:[#allocation2 + $0x38] sm:$0xff]
    %vm53 = vcmask 523264
    %v55 = vsel %vm53, %v43, 0
    %v58 = vsel %vm53, %v44, 0
    %60 = vmatprep.subr.mxu0 0.0
    %v61 = vand.u32 %v45, 4294901760
    %62 = vmatpush1.msra.mxu0 %v61
    %63 = vmatprep.subr.mxu0 0.0
    %v64 = vand.u32 %v46, 4294901760
    %65 = vmatpush1.msra.mxu0 %v64
    %66 = vmatprep.subr.mxu0 0.0
    %v67 = vand.u32 %v47, 4294901760
    %68 = vmatpush1.msra.mxu0 %v67
    %69 = vmatprep.subr.mxu0 0.0
    %v70 = vand.u32 %v48, 4294901760
    %71 = vmatpush1.msra.mxu0 %v70
    %72 = vmatprep.subr.mxu0 0.0
    %v73 = vand.u32 %v49, 4294901760
    %74 = vmatpush1.msra.mxu0 %v73
    %75 = vmatprep.subr.mxu0 0.0
    %v76 = vand.u32 %v50, 4294901760
    %77 = vmatpush1.msra.mxu0 %v76
    %78 = vmatprep.subr.mxu0 0.0
    %v79 = vand.u32 %v51, 4294901760
    %80 = vmatpush1.msra.mxu0 %v79
    %81 = vmatprep.subr.mxu0 0.0
    %v82 = vand.u32 %v52, 4294901760
    %83 = vmatpush1.msra.mxu0 %v82
    %84 = vmatprep.subr.mxu0 0.0
    %85 = vmatpush1.msra.mxu0 0.0
    %86 = vmatprep.subr.mxu0 0.0
    %87 = vmatpush1.msra.mxu0 0.0
    %88 = vmatprep.subr.mxu0 0.0
    %89 = vmatpush1.msra.mxu0 0.0
    %90 = vmatprep.subr.mxu0 0.0
    %91 = vmatpush1.msra.mxu0 0.0
    %92 = vmatprep.subr.mxu0 0.0
    %93 = vmatpush1.msra.mxu0 0.0
    %94 = vmatprep.subr.mxu0 0.0
    %95 = vmatpush1.msra.mxu0 0.0
    %96 = vmatprep.subr.mxu0 0.0
    %97 = vmatpush1.msra.mxu0 0.0
    %98 = vmatprep.subr.mxu0 0.0
    %99 = vmatpush1.msra.mxu0 0.0
    %100 = vmatprep.subr.mxu0 0.0
    %101 = vmatpush1.msra.mxu0 0.0
    %102 = vmatprep.subr.mxu0 0.0
    %103 = vmatpush1.msra.mxu0 0.0
    %104 = vmatprep.subr.mxu0 0.0
    %105 = vmatpush1.msra.mxu0 0.0
    %106 = vmatprep.subr.mxu0 0.0
    %107 = vmatpush1.msra.mxu0 0.0
    %108 = vmatprep.subr.mxu0 0.0
    %109 = vmatpush1.msra.mxu0 0.0
    %110 = vmatprep.subr.mxu0 0.0
    %111 = vmatpush1.msra.mxu0 0.0
    %112 = vmatprep.subr.mxu0 0.0
    %113 = vmatpush1.msra.mxu0 0.0
    %114 = vmatprep.subr.mxu0 0.0
    %115 = vmatpush1.msra.mxu0 0.0
    %116 = vmatprep.subr.mxu0 0.0
    %117 = vmatpush1.msra.mxu0 0.0
    %118 = vmatprep.subr.mxu0 0.0
    %119 = vmatpush1.msra.mxu0 0.0
    %120 = vmatprep.subr.mxu0 0.0
    %121 = vmatpush1.msra.mxu0 0.0
    %122 = vmatprep.subr.mxu0 0.0
    %123 = vmatpush1.msra.mxu0 0.0
    %124 = vmatprep.subr.mxu0 0.0
    %125 = vmatpush1.msra.mxu0 0.0
    %126 = vmatprep.subr.mxu0 0.0
    %127 = vmatpush1.msra.mxu0 0.0
    %128 = vmatprep.subr.mxu0 0.0
    %129 = vmatpush1.msra.mxu0 0.0
    %130 = vmatprep.subr.mxu0 0.0
    %131 = vmatpush1.msra.mxu0 0.0
    %132 = vmatprep.mubr.f32.mxu0 0.0
    %v133 = vand.u32 %v55, 4294901760
    %v134 = vsub.f32 %v55, %v133
    %v135 = vand.u32 %v134, 4294901760
    %v136 = vsub.f32 %v134, %v135
    %v137 = vand.u32 %v136, 4294901760
    %138 = vmatmul.mubr.f32.gmra.mrb[0].mxu0 %v137
    %v139 = vpop.f32.mrb[0].mxu0
    %v140 = vadd.f32 0.0, %v139
    %v141 = vpop.f32.mrb[0].mxu0
    %142 = vmatprep.mubr.f32.mxu0 0.0
    %v143 = vand.u32 %v58, 4294901760
    %v144 = vsub.f32 %v58, %v143
    %v145 = vand.u32 %v144, 4294901760
    %v146 = vsub.f32 %v144, %v145
    %v147 = vand.u32 %v146, 4294901760
    %148 = vmatmul.mubr.f32.gmra.mrb[0].mxu0 %v147
    %v149 = vpop.f32.mrb[0].mxu0
    %v150 = vadd.f32 0.0, %v149
    %v151 = vpop.f32.mrb[0].mxu0
    %152 = vdwg.mxu0
    %153 = vmatprep.subr.mxu0 0.0
    %v154 = vand.u32 %v45, 4294901760
    %v155 = vsub.f32 %v45, %v154
    %v156 = vand.u32 %v155, 4294901760
    %v157 = vsub.f32 %v155, %v156
    %v158 = vand.u32 %v157, 4294901760
    %159 = vmatpush1.msra.mxu0 %v158
    %160 = vmatprep.subr.mxu0 0.0
    %v161 = vand.u32 %v46, 4294901760
    %v162 = vsub.f32 %v46, %v161
    %v163 = vand.u32 %v162, 4294901760
    %v164 = vsub.f32 %v162, %v163
    %v165 = vand.u32 %v164, 4294901760
    %166 = vmatpush1.msra.mxu0 %v165
    %167 = vmatprep.subr.mxu0 0.0
    %v168 = vand.u32 %v47, 4294901760
    %v169 = vsub.f32 %v47, %v168
    %v170 = vand.u32 %v169, 4294901760
    %v171 = vsub.f32 %v169, %v170
    %v172 = vand.u32 %v171, 4294901760
    %173 = vmatpush1.msra.mxu0 %v172
    %174 = vmatprep.subr.mxu0 0.0
    %v175 = vand.u32 %v48, 4294901760
    %v176 = vsub.f32 %v48, %v175
    %v177 = vand.u32 %v176, 4294901760
    %v178 = vsub.f32 %v176, %v177
    %v179 = vand.u32 %v178, 4294901760
    %180 = vmatpush1.msra.mxu0 %v179
    %181 = vmatprep.subr.mxu0 0.0
    %v182 = vand.u32 %v49, 4294901760
    %v183 = vsub.f32 %v49, %v182
    %v184 = vand.u32 %v183, 4294901760
    %v185 = vsub.f32 %v183, %v184
    %v186 = vand.u32 %v185, 4294901760
    %187 = vmatpush1.msra.mxu0 %v186
    %188 = vmatprep.subr.mxu0 0.0
    %v189 = vand.u32 %v50, 4294901760
    %v190 = vsub.f32 %v50, %v189
    %v191 = vand.u32 %v190, 4294901760
    %v192 = vsub.f32 %v190, %v191
    %v193 = vand.u32 %v192, 4294901760
    %194 = vmatpush1.msra.mxu0 %v193
    %195 = vmatprep.subr.mxu0 0.0
    %v196 = vand.u32 %v51, 4294901760
    %v197 = vsub.f32 %v51, %v196
    %v198 = vand.u32 %v197, 4294901760
    %v199 = vsub.f32 %v197, %v198
    %v200 = vand.u32 %v199, 4294901760
    %201 = vmatpush1.msra.mxu0 %v200
    %202 = vmatprep.subr.mxu0 0.0
    %v203 = vand.u32 %v52, 4294901760
    %v204 = vsub.f32 %v52, %v203
    %v205 = vand.u32 %v204, 4294901760
    %v206 = vsub.f32 %v204, %v205
    %v207 = vand.u32 %v206, 4294901760
    %208 = vmatpush1.msra.mxu0 %v207
    %209 = vmatprep.subr.mxu0 0.0
    %210 = vmatpush1.msra.mxu0 0.0
    %211 = vmatprep.subr.mxu0 0.0
    %212 = vmatpush1.msra.mxu0 0.0
    %213 = vmatprep.subr.mxu0 0.0
    %214 = vmatpush1.msra.mxu0 0.0
    %215 = vmatprep.subr.mxu0 0.0
    %216 = vmatpush1.msra.mxu0 0.0
    %217 = vmatprep.subr.mxu0 0.0
    %218 = vmatpush1.msra.mxu0 0.0
    %219 = vmatprep.subr.mxu0 0.0
    %220 = vmatpush1.msra.mxu0 0.0
    %221 = vmatprep.subr.mxu0 0.0
    %222 = vmatpush1.msra.mxu0 0.0
    %223 = vmatprep.subr.mxu0 0.0
    %224 = vmatpush1.msra.mxu0 0.0
    %225 = vmatprep.subr.mxu0 0.0
    %226 = vmatpush1.msra.mxu0 0.0
    %227 = vmatprep.subr.mxu0 0.0
    %228 = vmatpush1.msra.mxu0 0.0
    %229 = vmatprep.subr.mxu0 0.0
    %230 = vmatpush1.msra.mxu0 0.0
    %231 = vmatprep.subr.mxu0 0.0
    %232 = vmatpush1.msra.mxu0 0.0
    %233 = vmatprep.subr.mxu0 0.0
    %234 = vmatpush1.msra.mxu0 0.0
    %235 = vmatprep.subr.mxu0 0.0
    %236 = vmatpush1.msra.mxu0 0.0
    %237 = vmatprep.subr.mxu0 0.0
    %238 = vmatpush1.msra.mxu0 0.0
    %239 = vmatprep.subr.mxu0 0.0
    %240 = vmatpush1.msra.mxu0 0.0
    %241 = vmatprep.subr.mxu0 0.0
    %242 = vmatpush1.msra.mxu0 0.0
    %243 = vmatprep.subr.mxu0 0.0
    %244 = vmatpush1.msra.mxu0 0.0
    %245 = vmatprep.subr.mxu0 0.0
    %246 = vmatpush1.msra.mxu0 0.0
    %247 = vmatprep.subr.mxu0 0.0
    %248 = vmatpush1.msra.mxu0 0.0
    %249 = vmatprep.subr.mxu0 0.0
    %250 = vmatpush1.msra.mxu0 0.0
    %251 = vmatprep.subr.mxu0 0.0
    %252 = vmatpush1.msra.mxu0 0.0
    %253 = vmatprep.subr.mxu0 0.0
    %254 = vmatpush1.msra.mxu0 0.0
    %255 = vmatprep.subr.mxu0 0.0
    %256 = vmatpush1.msra.mxu0 0.0
    %257 = vmatprep.mubr.f32.mxu0 0.0
    %v258 = vand.u32 %v55, 4294901760
    %259 = vmatmul.mubr.f32.gmra.mrb[0].mxu0 %v258
    %v260 = vpop.f32.mrb[0].mxu0
    %v261 = vadd.f32 %v140, %v260
    %v262 = vpop.f32.mrb[0].mxu0
    %263 = vmatprep.mubr.f32.mxu0 0.0
    %v264 = vand.u32 %v58, 4294901760
    %265 = vmatmul.mubr.f32.gmra.mrb[0].mxu0 %v264
    %v266 = vpop.f32.mrb[0].mxu0
    %v267 = vadd.f32 %v150, %v266
    %v268 = vpop.f32.mrb[0].mxu0
    %269 = vdwg.mxu0
    %270 = vmatprep.subr.mxu0 0.0
    %v271 = vand.u32 %v45, 4294901760
    %v272 = vsub.f32 %v45, %v271
    %273 = vmatpush1.msra.mxu0 %v272
    %274 = vmatprep.subr.mxu0 0.0
    %v275 = vand.u32 %v46, 4294901760
    %v276 = vsub.f32 %v46, %v275
    %277 = vmatpush1.msra.mxu0 %v276
    %278 = vmatprep.subr.mxu0 0.0
    %v279 = vand.u32 %v47, 4294901760
    %v280 = vsub.f32 %v47, %v279
    %281 = vmatpush1.msra.mxu0 %v280
    %282 = vmatprep.subr.mxu0 0.0
    %v283 = vand.u32 %v48, 4294901760
    %v284 = vsub.f32 %v48, %v283
    %285 = vmatpush1.msra.mxu0 %v284
    %286 = vmatprep.subr.mxu0 0.0
    %v287 = vand.u32 %v49, 4294901760
    %v288 = vsub.f32 %v49, %v287
    %289 = vmatpush1.msra.mxu0 %v288
    %290 = vmatprep.subr.mxu0 0.0
    %v291 = vand.u32 %v50, 4294901760
    %v292 = vsub.f32 %v50, %v291
    %293 = vmatpush1.msra.mxu0 %v292
    %294 = vmatprep.subr.mxu0 0.0
    %v295 = vand.u32 %v51, 4294901760
    %v296 = vsub.f32 %v51, %v295
    %297 = vmatpush1.msra.mxu0 %v296
    %298 = vmatprep.subr.mxu0 0.0
    %v299 = vand.u32 %v52, 4294901760
    %v300 = vsub.f32 %v52, %v299
    %301 = vmatpush1.msra.mxu0 %v300
    %302 = vmatprep.subr.mxu0 0.0
    %303 = vmatpush1.msra.mxu0 0.0
    %304 = vmatprep.subr.mxu0 0.0
    %305 = vmatpush1.msra.mxu0 0.0
    %306 = vmatprep.subr.mxu0 0.0
    %307 = vmatpush1.msra.mxu0 0.0
    %308 = vmatprep.subr.mxu0 0.0
    %309 = vmatpush1.msra.mxu0 0.0
    %310 = vmatprep.subr.mxu0 0.0
    %311 = vmatpush1.msra.mxu0 0.0
    %312 = vmatprep.subr.mxu0 0.0
    %313 = vmatpush1.msra.mxu0 0.0
    %314 = vmatprep.subr.mxu0 0.0
    %315 = vmatpush1.msra.mxu0 0.0
    %316 = vmatprep.subr.mxu0 0.0
    %317 = vmatpush1.msra.mxu0 0.0
    %318 = vmatprep.subr.mxu0 0.0
    %319 = vmatpush1.msra.mxu0 0.0
    %320 = vmatprep.subr.mxu0 0.0
    %321 = vmatpush1.msra.mxu0 0.0
    %322 = vmatprep.subr.mxu0 0.0
    %323 = vmatpush1.msra.mxu0 0.0
    %324 = vmatprep.subr.mxu0 0.0
    %325 = vmatpush1.msra.mxu0 0.0
    %326 = vmatprep.subr.mxu0 0.0
    %327 = vmatpush1.msra.mxu0 0.0
    %328 = vmatprep.subr.mxu0 0.0
    %329 = vmatpush1.msra.mxu0 0.0
    %330 = vmatprep.subr.mxu0 0.0
    %331 = vmatpush1.msra.mxu0 0.0
    %332 = vmatprep.subr.mxu0 0.0
    %333 = vmatpush1.msra.mxu0 0.0
    %334 = vmatprep.subr.mxu0 0.0
    %335 = vmatpush1.msra.mxu0 0.0
    %336 = vmatprep.subr.mxu0 0.0
    %337 = vmatpush1.msra.mxu0 0.0
    %338 = vmatprep.subr.mxu0 0.0
    %339 = vmatpush1.msra.mxu0 0.0
    %340 = vmatprep.subr.mxu0 0.0
    %341 = vmatpush1.msra.mxu0 0.0
    %342 = vmatprep.subr.mxu0 0.0
    %343 = vmatpush1.msra.mxu0 0.0
    %344 = vmatprep.subr.mxu0 0.0
    %345 = vmatpush1.msra.mxu0 0.0
    %346 = vmatprep.subr.mxu0 0.0
    %347 = vmatpush1.msra.mxu0 0.0
    %348 = vmatprep.subr.mxu0 0.0
    %349 = vmatpush1.msra.mxu0 0.0
    %350 = vmatprep.mubr.f32.mxu0 0.0
    %v351 = vand.u32 %v55, 4294901760
    %v352 = vsub.f32 %v55, %v351
    %353 = vmatmul.mubr.f32.gmra.mrb[0].mxu0 %v352
    %v354 = vpop.f32.mrb[0].mxu0
    %v355 = vadd.f32 %v261, %v354
    %v356 = vpop.f32.mrb[0].mxu0
    %357 = vmatprep.mubr.f32.mxu0 0.0
    %v358 = vand.u32 %v58, 4294901760
    %v359 = vsub.f32 %v58, %v358
    %360 = vmatmul.mubr.f32.gmra.mrb[0].mxu0 %v359
    %v361 = vpop.f32.mrb[0].mxu0
    %v362 = vadd.f32 %v267, %v361
    %v363 = vpop.f32.mrb[0].mxu0
    %364 = vdwg.mxu0
    %365 = vmatprep.subr.mxu0 0.0
    %v366 = vand.u32 %v45, 4294901760
    %367 = vmatpush1.msra.mxu0 %v366
    %368 = vmatprep.subr.mxu0 0.0
    %v369 = vand.u32 %v46, 4294901760
    %370 = vmatpush1.msra.mxu0 %v369
    %371 = vmatprep.subr.mxu0 0.0
    %v372 = vand.u32 %v47, 4294901760
    %373 = vmatpush1.msra.mxu0 %v372
    %374 = vmatprep.subr.mxu0 0.0
    %v375 = vand.u32 %v48, 4294901760
    %376 = vmatpush1.msra.mxu0 %v375
    %377 = vmatprep.subr.mxu0 0.0
    %v378 = vand.u32 %v49, 4294901760
    %379 = vmatpush1.msra.mxu0 %v378
    %380 = vmatprep.subr.mxu0 0.0
    %v381 = vand.u32 %v50, 4294901760
    %382 = vmatpush1.msra.mxu0 %v381
    %383 = vmatprep.subr.mxu0 0.0
    %v384 = vand.u32 %v51, 4294901760
    %385 = vmatpush1.msra.mxu0 %v384
    %386 = vmatprep.subr.mxu0 0.0
    %v387 = vand.u32 %v52, 4294901760
    %388 = vmatpush1.msra.mxu0 %v387
    %389 = vmatprep.subr.mxu0 0.0
    %390 = vmatpush1.msra.mxu0 0.0
    %391 = vmatprep.subr.mxu0 0.0
    %392 = vmatpush1.msra.mxu0 0.0
    %393 = vmatprep.subr.mxu0 0.0
    %394 = vmatpush1.msra.mxu0 0.0
    %395 = vmatprep.subr.mxu0 0.0
    %396 = vmatpush1.msra.mxu0 0.0
    %397 = vmatprep.subr.mxu0 0.0
    %398 = vmatpush1.msra.mxu0 0.0
    %399 = vmatprep.subr.mxu0 0.0
    %400 = vmatpush1.msra.mxu0 0.0
    %401 = vmatprep.subr.mxu0 0.0
    %402 = vmatpush1.msra.mxu0 0.0
    %403 = vmatprep.subr.mxu0 0.0
    %404 = vmatpush1.msra.mxu0 0.0
    %405 = vmatprep.subr.mxu0 0.0
    %406 = vmatpush1.msra.mxu0 0.0
    %407 = vmatprep.subr.mxu0 0.0
    %408 = vmatpush1.msra.mxu0 0.0
    %409 = vmatprep.subr.mxu0 0.0
    %410 = vmatpush1.msra.mxu0 0.0
    %411 = vmatprep.subr.mxu0 0.0
    %412 = vmatpush1.msra.mxu0 0.0
    %413 = vmatprep.subr.mxu0 0.0
    %414 = vmatpush1.msra.mxu0 0.0
    %415 = vmatprep.subr.mxu0 0.0
    %416 = vmatpush1.msra.mxu0 0.0
    %417 = vmatprep.subr.mxu0 0.0
    %418 = vmatpush1.msra.mxu0 0.0
    %419 = vmatprep.subr.mxu0 0.0
    %420 = vmatpush1.msra.mxu0 0.0
    %421 = vmatprep.subr.mxu0 0.0
    %422 = vmatpush1.msra.mxu0 0.0
    %423 = vmatprep.subr.mxu0 0.0
    %424 = vmatpush1.msra.mxu0 0.0
    %425 = vmatprep.subr.mxu0 0.0
    %426 = vmatpush1.msra.mxu0 0.0
    %427 = vmatprep.subr.mxu0 0.0
    %428 = vmatpush1.msra.mxu0 0.0
    %429 = vmatprep.subr.mxu0 0.0
    %430 = vmatpush1.msra.mxu0 0.0
    %431 = vmatprep.subr.mxu0 0.0
    %432 = vmatpush1.msra.mxu0 0.0
    %433 = vmatprep.subr.mxu0 0.0
    %434 = vmatpush1.msra.mxu0 0.0
    %435 = vmatprep.subr.mxu0 0.0
    %436 = vmatpush1.msra.mxu0 0.0
    %437 = vmatprep.mubr.f32.mxu0 0.0
    %v438 = vand.u32 %v55, 4294901760
    %v439 = vsub.f32 %v55, %v438
    %v440 = vand.u32 %v439, 4294901760
    %441 = vmatmul.mubr.f32.gmra.mrb[0].mxu0 %v440
    %v442 = vpop.f32.mrb[0].mxu0
    %v443 = vadd.f32 %v355, %v442
    %v444 = vpop.f32.mrb[0].mxu0
    %445 = vmatprep.mubr.f32.mxu0 0.0
    %v446 = vand.u32 %v58, 4294901760
    %v447 = vsub.f32 %v58, %v446
    %v448 = vand.u32 %v447, 4294901760
    %449 = vmatmul.mubr.f32.gmra.mrb[0].mxu0 %v448
    %v450 = vpop.f32.mrb[0].mxu0
    %v451 = vadd.f32 %v362, %v450
    %v452 = vpop.f32.mrb[0].mxu0
    %453 = vdwg.mxu0
    %454 = vmatprep.subr.mxu0 0.0
    %v455 = vand.u32 %v45, 4294901760
    %v456 = vsub.f32 %v45, %v455
    %v457 = vand.u32 %v456, 4294901760
    %458 = vmatpush1.msra.mxu0 %v457
    %459 = vmatprep.subr.mxu0 0.0
    %v460 = vand.u32 %v46, 4294901760
    %v461 = vsub.f32 %v46, %v460
    %v462 = vand.u32 %v461, 4294901760
    %463 = vmatpush1.msra.mxu0 %v462
    %464 = vmatprep.subr.mxu0 0.0
    %v465 = vand.u32 %v47, 4294901760
    %v466 = vsub.f32 %v47, %v465
    %v467 = vand.u32 %v466, 4294901760
    %468 = vmatpush1.msra.mxu0 %v467
    %469 = vmatprep.subr.mxu0 0.0
    %v470 = vand.u32 %v48, 4294901760
    %v471 = vsub.f32 %v48, %v470
    %v472 = vand.u32 %v471, 4294901760
    %473 = vmatpush1.msra.mxu0 %v472
    %474 = vmatprep.subr.mxu0 0.0
    %v475 = vand.u32 %v49, 4294901760
    %v476 = vsub.f32 %v49, %v475
    %v477 = vand.u32 %v476, 4294901760
    %478 = vmatpush1.msra.mxu0 %v477
    %479 = vmatprep.subr.mxu0 0.0
    %v480 = vand.u32 %v50, 4294901760
    %v481 = vsub.f32 %v50, %v480
    %v482 = vand.u32 %v481, 4294901760
    %483 = vmatpush1.msra.mxu0 %v482
    %484 = vmatprep.subr.mxu0 0.0
    %v485 = vand.u32 %v51, 4294901760
    %v486 = vsub.f32 %v51, %v485
    %v487 = vand.u32 %v486, 4294901760
    %488 = vmatpush1.msra.mxu0 %v487
    %489 = vmatprep.subr.mxu0 0.0
    %v490 = vand.u32 %v52, 4294901760
    %v491 = vsub.f32 %v52, %v490
    %v492 = vand.u32 %v491, 4294901760
    %493 = vmatpush1.msra.mxu0 %v492
    %494 = vmatprep.subr.mxu0 0.0
    %495 = vmatpush1.msra.mxu0 0.0
    %496 = vmatprep.subr.mxu0 0.0
    %497 = vmatpush1.msra.mxu0 0.0
    %498 = vmatprep.subr.mxu0 0.0
    %499 = vmatpush1.msra.mxu0 0.0
    %500 = vmatprep.subr.mxu0 0.0
    %501 = vmatpush1.msra.mxu0 0.0
    %502 = vmatprep.subr.mxu0 0.0
    %503 = vmatpush1.msra.mxu0 0.0
    %504 = vmatprep.subr.mxu0 0.0
    %505 = vmatpush1.msra.mxu0 0.0
    %506 = vmatprep.subr.mxu0 0.0
    %507 = vmatpush1.msra.mxu0 0.0
    %508 = vmatprep.subr.mxu0 0.0
    %509 = vmatpush1.msra.mxu0 0.0
    %510 = vmatprep.subr.mxu0 0.0
    %511 = vmatpush1.msra.mxu0 0.0
    %512 = vmatprep.subr.mxu0 0.0
    %513 = vmatpush1.msra.mxu0 0.0
    %514 = vmatprep.subr.mxu0 0.0
    %515 = vmatpush1.msra.mxu0 0.0
    %516 = vmatprep.subr.mxu0 0.0
    %517 = vmatpush1.msra.mxu0 0.0
    %518 = vmatprep.subr.mxu0 0.0
    %519 = vmatpush1.msra.mxu0 0.0
    %520 = vmatprep.subr.mxu0 0.0
    %521 = vmatpush1.msra.mxu0 0.0
    %522 = vmatprep.subr.mxu0 0.0
    %523 = vmatpush1.msra.mxu0 0.0
    %524 = vmatprep.subr.mxu0 0.0
    %525 = vmatpush1.msra.mxu0 0.0
    %526 = vmatprep.subr.mxu0 0.0
    %527 = vmatpush1.msra.mxu0 0.0
    %528 = vmatprep.subr.mxu0 0.0
    %529 = vmatpush1.msra.mxu0 0.0
    %530 = vmatprep.subr.mxu0 0.0
    %531 = vmatpush1.msra.mxu0 0.0
    %532 = vmatprep.subr.mxu0 0.0
    %533 = vmatpush1.msra.mxu0 0.0
    %534 = vmatprep.subr.mxu0 0.0
    %535 = vmatpush1.msra.mxu0 0.0
    %536 = vmatprep.subr.mxu0 0.0
    %537 = vmatpush1.msra.mxu0 0.0
    %538 = vmatprep.subr.mxu0 0.0
    %539 = vmatpush1.msra.mxu0 0.0
    %540 = vmatprep.subr.mxu0 0.0
    %541 = vmatpush1.msra.mxu0 0.0
    %542 = vmatprep.mubr.f32.mxu0 0.0
    %v543 = vand.u32 %v55, 4294901760
    %544 = vmatmul.mubr.f32.gmra.mrb[0].mxu0 %v543
    %v545 = vpop.f32.mrb[0].mxu0
    %v546 = vadd.f32 %v443, %v545
    %v547 = vpop.f32.mrb[0].mxu0
    %548 = vmatprep.mubr.f32.mxu0 0.0
    %v549 = vand.u32 %v58, 4294901760
    %550 = vmatmul.mubr.f32.gmra.mrb[0].mxu0 %v549
    %v551 = vpop.f32.mrb[0].mxu0
    %v552 = vadd.f32 %v451, %v551
    %v553 = vpop.f32.mrb[0].mxu0
    %554 = vdwg.mxu0
    %555 = vmatprep.subr.mxu0 0.0
    %v556 = vand.u32 %v45, 4294901760
    %557 = vmatpush1.msra.mxu0 %v556
    %558 = vmatprep.subr.mxu0 0.0
    %v559 = vand.u32 %v46, 4294901760
    %560 = vmatpush1.msra.mxu0 %v559
    %561 = vmatprep.subr.mxu0 0.0
    %v562 = vand.u32 %v47, 4294901760
    %563 = vmatpush1.msra.mxu0 %v562
    %564 = vmatprep.subr.mxu0 0.0
    %v565 = vand.u32 %v48, 4294901760
    %566 = vmatpush1.msra.mxu0 %v565
    %567 = vmatprep.subr.mxu0 0.0
    %v568 = vand.u32 %v49, 4294901760
    %569 = vmatpush1.msra.mxu0 %v568
    %570 = vmatprep.subr.mxu0 0.0
    %v571 = vand.u32 %v50, 4294901760
    %572 = vmatpush1.msra.mxu0 %v571
    %573 = vmatprep.subr.mxu0 0.0
    %v574 = vand.u32 %v51, 4294901760
    %575 = vmatpush1.msra.mxu0 %v574
    %576 = vmatprep.subr.mxu0 0.0
    %v577 = vand.u32 %v52, 4294901760
    %578 = vmatpush1.msra.mxu0 %v577
    %579 = vmatprep.subr.mxu0 0.0
    %580 = vmatpush1.msra.mxu0 0.0
    %581 = vmatprep.subr.mxu0 0.0
    %582 = vmatpush1.msra.mxu0 0.0
    %583 = vmatprep.subr.mxu0 0.0
    %584 = vmatpush1.msra.mxu0 0.0
    %585 = vmatprep.subr.mxu0 0.0
    %586 = vmatpush1.msra.mxu0 0.0
    %587 = vmatprep.subr.mxu0 0.0
    %588 = vmatpush1.msra.mxu0 0.0
    %589 = vmatprep.subr.mxu0 0.0
    %590 = vmatpush1.msra.mxu0 0.0
    %591 = vmatprep.subr.mxu0 0.0
    %592 = vmatpush1.msra.mxu0 0.0
    %593 = vmatprep.subr.mxu0 0.0
    %594 = vmatpush1.msra.mxu0 0.0
    %595 = vmatprep.subr.mxu0 0.0
    %596 = vmatpush1.msra.mxu0 0.0
    %597 = vmatprep.subr.mxu0 0.0
    %598 = vmatpush1.msra.mxu0 0.0
    %599 = vmatprep.subr.mxu0 0.0
    %600 = vmatpush1.msra.mxu0 0.0
    %601 = vmatprep.subr.mxu0 0.0
    %602 = vmatpush1.msra.mxu0 0.0
    %603 = vmatprep.subr.mxu0 0.0
    %604 = vmatpush1.msra.mxu0 0.0
    %605 = vmatprep.subr.mxu0 0.0
    %606 = vmatpush1.msra.mxu0 0.0
    %607 = vmatprep.subr.mxu0 0.0
    %608 = vmatpush1.msra.mxu0 0.0
    %609 = vmatprep.subr.mxu0 0.0
    %610 = vmatpush1.msra.mxu0 0.0
    %611 = vmatprep.subr.mxu0 0.0
    %612 = vmatpush1.msra.mxu0 0.0
    %613 = vmatprep.subr.mxu0 0.0
    %614 = vmatpush1.msra.mxu0 0.0
    %615 = vmatprep.subr.mxu0 0.0
    %616 = vmatpush1.msra.mxu0 0.0
    %617 = vmatprep.subr.mxu0 0.0
    %618 = vmatpush1.msra.mxu0 0.0
    %619 = vmatprep.subr.mxu0 0.0
    %620 = vmatpush1.msra.mxu0 0.0
    %621 = vmatprep.subr.mxu0 0.0
    %622 = vmatpush1.msra.mxu0 0.0
    %623 = vmatprep.subr.mxu0 0.0
    %624 = vmatpush1.msra.mxu0 0.0
    %625 = vmatprep.subr.mxu0 0.0
    %626 = vmatpush1.msra.mxu0 0.0
    %627 = vmatprep.mubr.f32.mxu0 0.0
    %v628 = vand.u32 %v55, 4294901760
    %629 = vmatmul.mubr.f32.gmra.mrb[0].mxu0 %v628
    %v630 = vpop.f32.mrb[0].mxu0
    %v631 = vadd.f32 %v546, %v630
    %v632 = vpop.f32.mrb[0].mxu0
    %633 = vmatprep.mubr.f32.mxu0 0.0
    %v634 = vand.u32 %v58, 4294901760
    %635 = vmatmul.mubr.f32.gmra.mrb[0].mxu0 %v634
    %v636 = vpop.f32.mrb[0].mxu0
    %v637 = vadd.f32 %v552, %v636
    %v638 = vpop.f32.mrb[0].mxu0
    %639 = vdwg.mxu0
    %v640 = vld [vmem:[%s2] sm:$0xff]
    %v641 = vmul.f32 %v631, 11.313708
    %v642 = vmul.f32 %v637, 11.313708
    %v643 = vadd.f32 %v641, %v640
    %v644 = vadd.f32 %v642, %v640
    %645 = vst [vmem:[#allocation5] sm:$0xff] %v643
    %646 = vst [vmem:[#allocation5 + $0x8] sm:$0xff] %v644
    // Predicated region
    $region18: #{tpu_custom_call.1} parent=1 // pred_check
      _
    $region19: #{tpu_custom_call.1} parent=1 // pred_check_branch
      %648 = sbr.rel (0) target = $region21
    $region20: #{tpu_custom_call.1} parent=1 // pred_region
      %s650 = ssub.s32 256, 256
      %651 = vsyncadd [#allocation4], %s650
      %s652 = sshll.u32 [#allocation5], 4
      %s653 = int_to_ptr.vmem [resolvable:$true] %s652
      %658 = dma.vmem_to_hbm [thread:$0]  %s653, 256, %s3, [#allocation4], 128, 128, 8
    $region21: #{tpu_custom_call.1} parent=1 // pred_fallthru
      _
    // Predicated region
    $region22: #{tpu_custom_call.1} parent=1 // pred_check
      _
    $region23: #{tpu_custom_call.1} parent=1 // pred_check_branch
      %660 = sbr.rel (0) target = $region25
    $region24: #{tpu_custom_call.1} parent=1 // pred_region
      %661 = dma.done [#allocation4], 256
    $region25: #{tpu_custom_call.1} parent=1 // pred_fallthru
      _
    %662 = vsyncpa [#allocation3], 1
    %663 = vsyncpa [#allocation4], 1

</llo_original>
